<compile_context>
chip_gen: v7x
topology: tpu7x:2x2x1
jax: 0.10.0
libtpu: 0.0.40
codegen_flags: <defaults>
</compile_context>

<pallas_src>
import jax
import jax.numpy as jnp
from jax.experimental import pallas as pl
from jax.experimental.pallas import tpu as pltpu


def _round_up(x, m):
    return (x + m - 1) // m * m


# ----------------------------------------------------------------------------
# Pallas kernel: whole MDSPP forward for `nb` batch elements per grid step.
#
#   x     : (nb, Cin, HW)        bf16 input feature maps, pixels on lanes
#   pt    : (HW, S2C)            column-concatenated adaptive-avg-pool matrices
#   ut    : (S2C, HW)            row-concatenated bilinear-upsample matrices
#   wf    : (S*Cout, Cin)        row-stacked folded stage weights (dw*pw*BN)
#   sh    : (S*Cout, 1)          row-stacked stage BN shifts (f32)
#   msk   : (S*Cout, S2C)        0/1 block-diagonal mask (f32)
#   wbs   : (Cout, S*Cout)       bottleneck weight columns for the pyramid branches
#   wbx   : (Cout, Cin)          bottleneck weight columns for the identity branch
#   bsh   : (Cout, 1)            bottleneck BN shift (f32)
# ----------------------------------------------------------------------------
def _mdspp_kernel(x_ref, pt_ref, ut_ref, wf_ref, sh_ref, msk_ref,
                  wbs_ref, wbx_ref, bsh_ref, o_ref):
    nb = x_ref.shape[0]
    s2c = pt_ref.shape[1]

    pt = pt_ref[...]
    # 1) AdaptiveAvgPool for every pyramid size, all sub-images, one matmul each
    #    sub-image, concatenated along lanes (128-aligned): (Cin, nb*S2C).
    pooled = jnp.concatenate(
        [jnp.dot(x_ref[b], pt, preferred_element_type=jnp.float32)
         for b in range(nb)], axis=1).astype(jnp.bfloat16)

    # 2) All four stage convs fused: (S*Cout, nb*S2C); BN shift + ReLU epilogue,
    #    then zero the off-diagonal (wrong-stage) and lane-padding columns.
    stage = jnp.dot(wf_ref[...], pooled, preferred_element_type=jnp.float32)
    stage = jnp.maximum(stage + sh_ref[...], 0.0)
    mask = msk_ref[...]
    if nb > 1:
        mask = jnp.tile(mask, (1, nb))
    stage = (stage * mask).astype(jnp.bfloat16)

    # 3) Bottleneck pyramid-branch columns applied at pooled width (reassociation):
    #    (Cout, S*Cout) @ (S*Cout, nb*S2C) -> (Cout, nb*S2C).
    tmp = jnp.dot(wbs_ref[...], stage,
                  preferred_element_type=jnp.float32).astype(jnp.bfloat16)

    ut = ut_ref[...]
    wbx = wbx_ref[...]
    bsh = bsh_ref[...]
    # 4) Per sub-image: one upsample matmul (K=S2C) + the identity-branch matmul,
    #    bottleneck BN shift + ReLU epilogue, lane-dense store.
    for b in range(nb):
        up = jnp.dot(tmp[:, b * s2c:(b + 1) * s2c], ut,
                     preferred_element_type=jnp.float32)           # (Cout, HW)
        ident = jnp.dot(wbx, x_ref[b],
                        preferred_element_type=jnp.float32)        # (Cout, HW)
        o_ref[b] = jnp.maximum(ident + up + bsh, 0.0).astype(o_ref.dtype)


def _pick_batch_block(n):
    """Largest divisor of n that keeps >= 2 grid steps (feeds both v7x TCs)."""
    if n < 4:
        return 1
    nb = n // 2
    while n % nb:
        nb -= 1
    return nb


def mdspp_forward(kparams, x, batch_block=None):
    """MDSPP forward. x: (N, Cin, H, W) f32 NCHW -> (N, Cout, H, W) f32."""
    N, Cin, H, W = x.shape
    HW = H * W
    s2c = kparams['pt'].shape[1]
    scout = kparams['wf'].shape[0]           # S * Cout
    cout = kparams['wbx'].shape[0]

    nb = batch_block if batch_block is not None else _pick_batch_block(N)
    assert N % nb == 0, "batch_block must divide the batch size"
    grid = (N // nb,)

    # bf16 input cast happens on the host: halves the HBM->VMEM DMA per step.
    x_flat = x.reshape(N, Cin, HW).astype(kparams['pt'].dtype)

    def const_spec(shape):
        return pl.BlockSpec(shape, lambda n, _s=shape: (0,) * len(_s))

    # Rough per-step VMEM footprint (double-buffered blocks); clamp to a safe range.
    blk_bytes = (nb * Cin * HW * 2 + nb * cout * HW * 4          # x / out blocks
                 + 2 * HW * s2c * 2                              # pt, ut
                 + scout * Cin * 2 + scout * s2c * 4             # wf, mask
                 + cout * scout * 2 + cout * Cin * 2             # wbs, wbx
                 + (scout + cout) * 4)                           # shifts
    vmem_limit = int(min(max(4 * 2 * blk_bytes, 32 * 1024 * 1024),
                         64 * 1024 * 1024))

    out = pl.pallas_call(
        _mdspp_kernel,
        out_shape=jax.ShapeDtypeStruct((N, cout, HW), jnp.float32),
        grid=grid,
        in_specs=[
            pl.BlockSpec((nb, Cin, HW), lambda n: (n, 0, 0)),    # x
            const_spec((HW, s2c)),                               # pt_cat
            const_spec((s2c, HW)),                               # ut_cat
            const_spec((scout, Cin)),                            # wf_cat
            const_spec((scout, 1)),                              # stage shifts
            const_spec((scout, s2c)),                            # block-diag mask
            const_spec((cout, scout)),                           # wbs (pyramid cols)
            const_spec((cout, Cin)),                             # wbx (identity cols)
            const_spec((cout, 1)),                               # bottleneck shift
        ],
        out_specs=pl.BlockSpec((nb, cout, HW), lambda n: (n, 0, 0)),
        compiler_params=pltpu.CompilerParams(
            dimension_semantics=("parallel",),
            vmem_limit_bytes=vmem_limit),
    )(x_flat, kparams['pt'], kparams['ut'], kparams['wf'], kparams['shift'],
      kparams['mask'], kparams['wbs'], kparams['wbx'], kparams['bshift'])

    return out.reshape(N, cout, H, W)


# ----------------------------------------------------------------------------
# One-time (outside jit) parameter preparation: fold weights, build concatenated
# pooling / interpolation matrices + block-diagonal mask, cast MXU operands to bf16.
# ----------------------------------------------------------------------------
def _pool_matrix_1d(out_s, in_len):
    """(out_s, in_len) uniform averaging matrix == AdaptiveAvgPool1d when divisible."""
    assert in_len % out_s == 0
    win = in_len // out_s
    owner = jnp.arange(in_len) // win
    return (owner[None, :] == jnp.arange(out_s)[:, None]).astype(jnp.float32) / win


def _interp_matrix_1d(out_len, in_len):
    """(out_len, in_len) bilinear matrix, F.interpolate(align_corners=False) semantics."""
    if in_len == 1:
        return jnp.ones((out_len, 1), jnp.float32)
    scale = in_len / out_len
    src = jnp.maximum((jnp.arange(out_len, dtype=jnp.float32) + 0.5) * scale - 0.5, 0.0)
    i0 = jnp.minimum(jnp.floor(src).astype(jnp.int32), in_len - 1)
    i1 = jnp.minimum(i0 + 1, in_len - 1)
    w1 = src - i0.astype(jnp.float32)
    w0 = 1.0 - w1
    rows = jnp.arange(out_len)
    m = jnp.zeros((out_len, in_len), jnp.float32)
    m = m.at[rows, i0].add(w0)
    m = m.at[rows, i1].add(w1)
    return m


def _fold_dsconv(p, eps=1e-5):
    """DepthSeparableConv(k=1, p=0) + BN(eval): depthwise scale, pointwise, BN affine."""
    cout, cin = p['pw'].shape[:2]
    scale = p['bn_g'] / jnp.sqrt(p['bn_v'] + eps)
    w = scale[:, None] * p['pw'].reshape(cout, cin) * p['dw'].reshape(1, cin)
    shift = p['bn_b'] - p['bn_m'] * scale
    return w, shift


def prepare_mdspp_params(raw, H, W, sizes=(1, 2, 4, 8), compute_dtype=jnp.bfloat16):
    for s in sizes:
        assert H % s == 0 and W % s == 0, "uniform adaptive pooling requires divisibility"
    s2_list = [s * s for s in sizes]
    s2sum = sum(s2_list)
    s2cat = max(128, _round_up(s2sum, 128))        # lane-pad the pooled axis

    pt_blocks, ut_blocks = [], []
    for s in sizes:
        P = jnp.kron(_pool_matrix_1d(s, H), _pool_matrix_1d(s, W))      # (s*s, HW)
        U = jnp.kron(_interp_matrix_1d(H, s), _interp_matrix_1d(W, s))  # (HW, s*s)
        pt_blocks.append(P.T)                                           # (HW, s*s)
        ut_blocks.append(U.T)                                           # (s*s, HW)
    pt_cat = jnp.pad(jnp.concatenate(pt_blocks, axis=1),
                     ((0, 0), (0, s2cat - s2sum)))                       # (HW, S2C)
    ut_cat = jnp.pad(jnp.concatenate(ut_blocks, axis=0),
                     ((0, s2cat - s2sum), (0, 0)))                       # (S2C, HW)

    folded = [_fold_dsconv(st) for st in raw['stages']]
    wf_cat = jnp.concatenate([f[0] for f in folded], axis=0)             # (S*Cout, Cin)
    shift_cat = jnp.concatenate([f[1] for f in folded])[:, None]         # (S*Cout, 1)
    cout, cin = folded[0][0].shape

    wb, bshift = _fold_dsconv(raw['bottleneck'])                         # (Cout, Cin+S*Cout)
    wbx = wb[:, :cin]                                                    # (Cout, Cin)
    wbs_hcat = wb[:, cin:]                                               # (Cout, S*Cout)

    # 0/1 block-diagonal mask: stage i's rows keep only stage i's pooled columns.
    mask = jnp.zeros((len(sizes) * cout, s2cat), jnp.float32)
    off = 0
    for i, s2 in enumerate(s2_list):
        mask = mask.at[i * cout:(i + 1) * cout, off:off + s2].set(1.0)
        off += s2

    return {
        'pt': pt_cat.astype(compute_dtype),
        'ut': ut_cat.astype(compute_dtype),
        'wf': wf_cat.astype(compute_dtype),
        'shift': shift_cat.astype(jnp.float32),
        'mask': mask,
        'wbs': wbs_hcat.astype(compute_dtype),
        'wbx': wbx.astype(compute_dtype),
        'bshift': bshift.reshape(cout, 1).astype(jnp.float32),
    }


def init_raw_params(key, in_channels, out_channels, sizes):
    """Raw parameters with the same shapes as the PyTorch module."""
    keys = iter(jax.random.split(key, 2 * (len(sizes) + 1) + 2))

    def dsconv(cin, cout):
        return {
            'dw': jax.random.normal(next(keys), (cin,), jnp.float32) * 0.1 + 1.0,
            'pw': jax.random.normal(next(keys), (cout, cin, 1, 1), jnp.float32) * 0.1,
            'bn_g': jnp.ones((cout,), jnp.float32),
            'bn_b': jnp.zeros((cout,), jnp.float32),
            'bn_m': jnp.zeros((cout,), jnp.float32),
            'bn_v': jnp.ones((cout,), jnp.float32),
        }

    return {
        'stages': [dsconv(in_channels, out_channels) for _ in sizes],
        'bottleneck': dsconv(len(sizes) * out_channels + in_channels, out_channels),
    }


# ----------------------------------------------------------------------------
# Pure-JAX f32 reference (mirrors the PyTorch module in eval mode) for a sanity check.
# ----------------------------------------------------------------------------
def _bilinear_resize_ref(y, H, W):
    Mh = _interp_matrix_1d(H, y.shape[2])
    Mw = _interp_matrix_1d(W, y.shape[3])
    return jnp.einsum('ip,jq,ncpq->ncij', Mh, Mw, y)


def mdspp_reference(raw, x, sizes):
    N, Cin, H, W = x.shape

    def dsconv(p, z):
        w, b = _fold_dsconv(p)
        return jnp.maximum(jnp.einsum('oc,nchw->nohw', w, z)
                           + b[None, :, None, None], 0.0)

    feats = [x]
    for s, p in zip(sizes, raw['stages']):
        pooled = x.reshape(N, Cin, s, H // s, s, W // s).mean(axis=(3, 5))
        feats.append(_bilinear_resize_ref(dsconv(p, pooled), H, W))
    return dsconv(raw['bottleneck'], jnp.concatenate(feats, axis=1))


if __name__ == "__main__":
    key = jax.random.PRNGKey(0)
    kx, kp = jax.random.split(key)

    N, Cin, Cout, H, W = 2, 32, 8, 16, 16
    sizes = (1, 2, 4, 8)

    x = jax.random.normal(kx, (N, Cin, H, W), jnp.float32)
    raw = init_raw_params(kp, Cin, Cout, sizes)
    kparams = prepare_mdspp_params(raw, H, W, sizes)

    fwd = jax.jit(mdspp_forward, static_argnames=("batch_block",))
    out = jax.block_until_ready(fwd(kparams, x))

    assert out.shape == (N, Cout, H, W), out.shape
    assert bool(jnp.all(jnp.isfinite(out)))

    ref = mdspp_reference(raw, x, sizes)
    max_err = float(jnp.max(jnp.abs(out - ref)))
    assert max_err < 5e-2, f"max abs err vs reference: {max_err}"

    print("KERNEL_OK")
</pallas_src>

<mosaic_0001>
module attributes {stable_mosaic.version = 11 : i64} {
  func.func @_mdspp_kernel(%arg0: i32, %arg1: memref<1x32x256xbf16, #tpu.memory_space<vmem>>, %arg2: memref<256x128xbf16, #tpu.memory_space<vmem>>, %arg3: memref<128x256xbf16, #tpu.memory_space<vmem>>, %arg4: memref<32x32xbf16, #tpu.memory_space<vmem>>, %arg5: memref<32x1xf32, #tpu.memory_space<vmem>>, %arg6: memref<32x128xf32, #tpu.memory_space<vmem>>, %arg7: memref<8x32xbf16, #tpu.memory_space<vmem>>, %arg8: memref<8x32xbf16, #tpu.memory_space<vmem>>, %arg9: memref<8x1xf32, #tpu.memory_space<vmem>>, %arg10: memref<1x8x256xf32, #tpu.memory_space<vmem>>) attributes {dimension_semantics = [#tpu.dimension_semantics<parallel>], iteration_bounds = array<i64: 2>, scalar_prefetch = 0 : i64, scratch_operands = 0 : i64, tpu.core_type = #tpu.core_type<tc>, window_params = [{transform_indices = @transform_0, window_bounds = array<i64: 1, 32, 256>}, {pipeline_mode = #tpu.pipeline_mode<synchronous>, transform_indices = @transform_1, window_bounds = array<i64: 256, 128>}, {pipeline_mode = #tpu.pipeline_mode<synchronous>, transform_indices = @transform_2, window_bounds = array<i64: 128, 256>}, {pipeline_mode = #tpu.pipeline_mode<synchronous>, transform_indices = @transform_3, window_bounds = array<i64: 32, 32>}, {pipeline_mode = #tpu.pipeline_mode<synchronous>, transform_indices = @transform_4, window_bounds = array<i64: 32, 1>}, {pipeline_mode = #tpu.pipeline_mode<synchronous>, transform_indices = @transform_5, window_bounds = array<i64: 32, 128>}, {pipeline_mode = #tpu.pipeline_mode<synchronous>, transform_indices = @transform_6, window_bounds = array<i64: 8, 32>}, {pipeline_mode = #tpu.pipeline_mode<synchronous>, transform_indices = @transform_7, window_bounds = array<i64: 8, 32>}, {pipeline_mode = #tpu.pipeline_mode<synchronous>, transform_indices = @transform_8, window_bounds = array<i64: 8, 1>}, {transform_indices = @transform_9, window_bounds = array<i64: 1, 8, 256>}]} {
    %c0 = arith.constant 0 : index
    %c0_0 = arith.constant 0 : index
    %0 = vector.load %arg2[%c0, %c0_0] : memref<256x128xbf16, #tpu.memory_space<vmem>>, vector<256x128xbf16>
    %c0_1 = arith.constant 0 : index
    %c0_2 = arith.constant 0 : index
    %c0_3 = arith.constant 0 : index
    %1 = vector.load %arg1[%c0_1, %c0_2, %c0_3] : memref<1x32x256xbf16, #tpu.memory_space<vmem>>, vector<1x32x256xbf16>
    %2 = vector.shape_cast %1 : vector<1x32x256xbf16> to vector<32x256xbf16>
    %cst = arith.constant dense<0.000000e+00> : vector<32x128xf32>
    %3 = tpu.matmul %2, %0, %cst {dimension_numbers = #tpu.dot_dimension_numbers<[1], [0], [0], [1], [0, 0, 1, 1], [], []>} : vector<32x256xbf16>, vector<256x128xbf16>, vector<32x128xf32> -> vector<32x128xf32>
    %4 = arith.truncf %3 : vector<32x128xf32> to vector<32x128xbf16>
    %c0_4 = arith.constant 0 : index
    %c0_5 = arith.constant 0 : index
    %5 = vector.load %arg4[%c0_4, %c0_5] : memref<32x32xbf16, #tpu.memory_space<vmem>>, vector<32x32xbf16>
    %cst_6 = arith.constant dense<0.000000e+00> : vector<32x128xf32>
    %6 = tpu.matmul %5, %4, %cst_6 {dimension_numbers = #tpu.dot_dimension_numbers<[1], [0], [0], [1], [0, 0, 1, 1], [], []>} : vector<32x32xbf16>, vector<32x128xbf16>, vector<32x128xf32> -> vector<32x128xf32>
    %c0_7 = arith.constant 0 : index
    %c0_8 = arith.constant 0 : index
    %7 = vector.load %arg5[%c0_7, %c0_8] : memref<32x1xf32, #tpu.memory_space<vmem>>, vector<32x1xf32>
    %8 = vector.broadcast %7 : vector<32x1xf32> to vector<32x128xf32>
    %9 = arith.addf %6, %8 : vector<32x128xf32>
    %cst_9 = arith.constant 0.000000e+00 : f32
    %10 = vector.broadcast %cst_9 : f32 to vector<32x128xf32>
    %11 = arith.maximumf %9, %10 : vector<32x128xf32>
    %c0_10 = arith.constant 0 : index
    %c0_11 = arith.constant 0 : index
    %12 = vector.load %arg6[%c0_10, %c0_11] : memref<32x128xf32, #tpu.memory_space<vmem>>, vector<32x128xf32>
    %13 = arith.mulf %11, %12 : vector<32x128xf32>
    %14 = arith.truncf %13 : vector<32x128xf32> to vector<32x128xbf16>
    %c0_12 = arith.constant 0 : index
    %c0_13 = arith.constant 0 : index
    %15 = vector.load %arg7[%c0_12, %c0_13] : memref<8x32xbf16, #tpu.memory_space<vmem>>, vector<8x32xbf16>
    %cst_14 = arith.constant dense<0.000000e+00> : vector<8x128xf32>
    %16 = tpu.matmul %15, %14, %cst_14 {dimension_numbers = #tpu.dot_dimension_numbers<[1], [0], [0], [1], [0, 0, 1, 1], [], []>} : vector<8x32xbf16>, vector<32x128xbf16>, vector<8x128xf32> -> vector<8x128xf32>
    %17 = arith.truncf %16 : vector<8x128xf32> to vector<8x128xbf16>
    %c0_15 = arith.constant 0 : index
    %c0_16 = arith.constant 0 : index
    %18 = vector.load %arg3[%c0_15, %c0_16] : memref<128x256xbf16, #tpu.memory_space<vmem>>, vector<128x256xbf16>
    %c0_17 = arith.constant 0 : index
    %c0_18 = arith.constant 0 : index
    %19 = vector.load %arg8[%c0_17, %c0_18] : memref<8x32xbf16, #tpu.memory_space<vmem>>, vector<8x32xbf16>
    %c0_19 = arith.constant 0 : index
    %c0_20 = arith.constant 0 : index
    %20 = vector.load %arg9[%c0_19, %c0_20] : memref<8x1xf32, #tpu.memory_space<vmem>>, vector<8x1xf32>
    %cst_21 = arith.constant dense<0.000000e+00> : vector<8x256xf32>
    %21 = tpu.matmul %17, %18, %cst_21 {dimension_numbers = #tpu.dot_dimension_numbers<[1], [0], [0], [1], [0, 0, 1, 1], [], []>} : vector<8x128xbf16>, vector<128x256xbf16>, vector<8x256xf32> -> vector<8x256xf32>
    %c0_22 = arith.constant 0 : index
    %c0_23 = arith.constant 0 : index
    %c0_24 = arith.constant 0 : index
    %22 = vector.load %arg1[%c0_22, %c0_23, %c0_24] : memref<1x32x256xbf16, #tpu.memory_space<vmem>>, vector<1x32x256xbf16>
    %23 = vector.shape_cast %22 : vector<1x32x256xbf16> to vector<32x256xbf16>
    %cst_25 = arith.constant dense<0.000000e+00> : vector<8x256xf32>
    %24 = tpu.matmul %19, %23, %cst_25 {dimension_numbers = #tpu.dot_dimension_numbers<[1], [0], [0], [1], [0, 0, 1, 1], [], []>} : vector<8x32xbf16>, vector<32x256xbf16>, vector<8x256xf32> -> vector<8x256xf32>
    %25 = arith.addf %24, %21 : vector<8x256xf32>
    %26 = vector.broadcast %20 : vector<8x1xf32> to vector<8x256xf32>
    %27 = arith.addf %25, %26 : vector<8x256xf32>
    %cst_26 = arith.constant 0.000000e+00 : f32
    %28 = vector.broadcast %cst_26 : f32 to vector<8x256xf32>
    %29 = arith.maximumf %27, %28 : vector<8x256xf32>
    %c0_27 = arith.constant 0 : index
    %c0_28 = arith.constant 0 : index
    %c0_29 = arith.constant 0 : index
    %30 = vector.load %arg10[%c0_27, %c0_28, %c0_29] : memref<1x8x256xf32, #tpu.memory_space<vmem>>, vector<1x8x256xf32>
    %31 = vector.shape_cast %30 : vector<1x8x256xf32> to vector<8x256xf32>
    %32 = vector.shape_cast %29 : vector<8x256xf32> to vector<1x8x256xf32>
    tpu.vector_store %arg10[%c0_27, %c0_28, %c0_29], %32 {strides = array<i32>} : memref<1x8x256xf32, #tpu.memory_space<vmem>>, vector<1x8x256xf32>,
    return
  }
  func.func @transform_0(%arg0: i32) -> (i32, i32, i32) {
    %c0_i32 = arith.constant 0 : i32
    %c0_i32_0 = arith.constant 0 : i32
    %c0_i32_1 = arith.constant 0 : i32
    return %arg0, %c0_i32, %c0_i32_0 : i32, i32, i32
  }
  func.func @transform_1(%arg0: i32) -> (i32, i32) {
    %c0_i32 = arith.constant 0 : i32
    %c0_i32_0 = arith.constant 0 : i32
    %c0_i32_1 = arith.constant 0 : i32
    return %c0_i32, %c0_i32_0 : i32, i32
  }
  func.func @transform_2(%arg0: i32) -> (i32, i32) {
    %c0_i32 = arith.constant 0 : i32
    %c0_i32_0 = arith.constant 0 : i32
    %c0_i32_1 = arith.constant 0 : i32
    return %c0_i32, %c0_i32_0 : i32, i32
  }
  func.func @transform_3(%arg0: i32) -> (i32, i32) {
    %c0_i32 = arith.constant 0 : i32
    %c0_i32_0 = arith.constant 0 : i32
    %c0_i32_1 = arith.constant 0 : i32
    return %c0_i32, %c0_i32_0 : i32, i32
  }
  func.func @transform_4(%arg0: i32) -> (i32, i32) {
    %c0_i32 = arith.constant 0 : i32
    %c0_i32_0 = arith.constant 0 : i32
    %c0_i32_1 = arith.constant 0 : i32
    return %c0_i32, %c0_i32_0 : i32, i32
  }
  func.func @transform_5(%arg0: i32) -> (i32, i32) {
    %c0_i32 = arith.constant 0 : i32
    %c0_i32_0 = arith.constant 0 : i32
    %c0_i32_1 = arith.constant 0 : i32
    return %c0_i32, %c0_i32_0 : i32, i32
  }
  func.func @transform_6(%arg0: i32) -> (i32, i32) {
    %c0_i32 = arith.constant 0 : i32
    %c0_i32_0 = arith.constant 0 : i32
    %c0_i32_1 = arith.constant 0 : i32
    return %c0_i32, %c0_i32_0 : i32, i32
  }
  func.func @transform_7(%arg0: i32) -> (i32, i32) {
    %c0_i32 = arith.constant 0 : i32
    %c0_i32_0 = arith.constant 0 : i32
    %c0_i32_1 = arith.constant 0 : i32
    return %c0_i32, %c0_i32_0 : i32, i32
  }
  func.func @transform_8(%arg0: i32) -> (i32, i32) {
    %c0_i32 = arith.constant 0 : i32
    %c0_i32_0 = arith.constant 0 : i32
    %c0_i32_1 = arith.constant 0 : i32
    return %c0_i32, %c0_i32_0 : i32, i32
  }
  func.func @transform_9(%arg0: i32) -> (i32, i32, i32) {
    %c0_i32 = arith.constant 0 : i32
    %c0_i32_0 = arith.constant 0 : i32
    %c0_i32_1 = arith.constant 0 : i32
    return %arg0, %c0_i32, %c0_i32_0 : i32, i32, i32
  }
}

</mosaic_0001>

<llo_original>
// kernel: mdspp_forward.1
$region0: #{mdspp_forward.1}
  #allocation0 [shape = 'u32[]', space=smem, size = 0x4, offset = 0x4, fixed_abs, tag = 'smem constant byte address 0x4 - core index']
  #allocation1 [shape = 'u32[144,128]{1,0:T(1,128)}', space=vmem, size = 0x12000, scoped, tag = 'internal scratch']
  %s0 = inlined_call_operand.vmem [shape: bf16[2,32,256], index: 0, kind: input, shape index: {}]
  %s1 = inlined_call_operand.vmem [shape: bf16[256,128], index: 1, kind: input, shape index: {}]
  %s2 = inlined_call_operand.vmem [shape: bf16[128,256], index: 2, kind: input, shape index: {}]
  %s3 = inlined_call_operand.vmem [shape: bf16[32,32], index: 3, kind: input, shape index: {}]
  %s4 = inlined_call_operand.vmem [shape: f32[32,1], index: 4, kind: input, shape index: {}]
  %s5 = inlined_call_operand.vmem [shape: f32[32,128], index: 5, kind: input, shape index: {}]
  %s6 = inlined_call_operand.vmem [shape: bf16[8,32], index: 6, kind: input, shape index: {}]
  %s7 = inlined_call_operand.vmem [shape: bf16[8,32], index: 7, kind: input, shape index: {}]
  %s8 = inlined_call_operand.vmem [shape: f32[8,1], index: 8, kind: input, shape index: {}]
  %s9 = inlined_call_operand.vmem [shape: f32[2,8,256], index: 9, kind: output, shape index: {}]
  %s10 = sld [smem:[#allocation0]]
  $region69: #{mdspp_forward.1} parent=0
    _
  %s12 = ssub.s32 1, %s10
  %s13 = scalar_select 0, %s12, %s10
  loop: start=0, step=1, limit=4
  $region2: #{mdspp_forward.1} parent=0 // loop_pre_header
    _
  $region3: #{mdspp_forward.1} parent=0 // loop_header
    %s15 = sphi 0, %s19
    %p16 = scmp.ge.s32.totalorder %s15, 4
    %s25 = sphi 0, %s27
    %s28 = sphi 0, %s25
    %s29 = sphi 0, %s28
    %s45 = sphi 0, %s29
    %s49 = sphi 0, %s49
    %s51 = sphi 0, %s49
    %s52 = sphi 0, %s51
    %s66 = sphi 0, %s52
    %s70 = sphi 0, %s70
    %s72 = sphi 0, %s70
    %s73 = sphi 0, %s72
    %s87 = sphi 0, %s73
    %s91 = sphi 0, %s91
    %s93 = sphi 0, %s91
    %s94 = sphi 0, %s93
    %s108 = sphi 0, %s94
    %s112 = sphi 0, %s112
    %s114 = sphi 0, %s112
    %s115 = sphi 0, %s114
    %s129 = sphi 0, %s115
    %s133 = sphi 0, %s133
    %s135 = sphi 0, %s133
    %s136 = sphi 0, %s135
    %s150 = sphi 0, %s136
    %s154 = sphi 0, %s154
    %s156 = sphi 0, %s154
    %s157 = sphi 0, %s156
    %s171 = sphi 0, %s157
    %s175 = sphi 0, %s175
    %s177 = sphi 0, %s175
    %s178 = sphi 0, %s177
    %s192 = sphi 0, %s178
    %s196 = sphi 0, %s196
    %s198 = sphi 0, %s196
    %s199 = sphi 0, %s198
    %s213 = sphi 0, %s199
    %s219 = sphi 0, %s221
    %s222 = sphi 0, %s219
    %s223 = sphi 0, %s222
    %s239 = sphi 0, %s223
  $region4: #{mdspp_forward.1} parent=0 // loop_header_branch
    %18 = sbr.rel (%p16) target = $region8
  $region5: #{mdspp_forward.1} parent=0 // loop_body
    %s20 = ssub.s32 %s15, 1
    %s21 = ssub.s32 %s15, 2
    %s22 = sadd.s32 %s15, 1
    %s23 = ssub.s32 %s15, %s22
    %p24 = scmp.eq.s32.totalorder %s23, 0
    %s26 = sadd.s32 %s25, 1
    %s27 = scalar_select %p24, %s25, %s26
    %p30 = pneg %p24
    %p31 = scmp.eq.s32.totalorder %s15, 1
    %p32 = por %p30, %p31
    %p33 = scmp.ne.s32.totalorder %s25, %s28
    %p34 = scmp.eq.s32.totalorder %s15, 0
    %p35 = por %p33, %p34
    %p36 = scmp.ne.s32.totalorder %s25, %s28
    %p37 = scmp.eq.s32.totalorder %s20, 1
    %p38 = por %p36, %p37
    %p39 = scmp.ne.s32.totalorder %s28, %s29
    %p40 = scmp.eq.s32.totalorder %s20, 0
    %p41 = por %p39, %p40
    %p42 = scmp.ne.s32.totalorder %s28, %s29
    %p43 = scmp.eq.s32.totalorder %s21, 1
    %p44 = por %p42, %p43
    %p46 = scmp.ne.s32.totalorder %s29, %s45
    %p47 = scmp.eq.s32.totalorder %s21, 0
    %p48 = por %p46, %p47
    %s50 = sadd.s32 %s49, 1
    %p53 = scmp.eq.s32.totalorder %s15, 1
    %p54 = scmp.ne.s32.totalorder %s49, %s51
    %p55 = scmp.eq.s32.totalorder %s15, 0
    %p56 = por %p54, %p55
    %p57 = scmp.ne.s32.totalorder %s49, %s51
    %p58 = scmp.eq.s32.totalorder %s20, 1
    %p59 = por %p57, %p58
    %p60 = scmp.ne.s32.totalorder %s51, %s52
    %p61 = scmp.eq.s32.totalorder %s20, 0
    %p62 = por %p60, %p61
    %p63 = scmp.ne.s32.totalorder %s51, %s52
    %p64 = scmp.eq.s32.totalorder %s21, 1
    %p65 = por %p63, %p64
    %p67 = scmp.ne.s32.totalorder %s52, %s66
    %p68 = scmp.eq.s32.totalorder %s21, 0
    %p69 = por %p67, %p68
    %s71 = sadd.s32 %s70, 1
    %p74 = scmp.eq.s32.totalorder %s15, 1
    %p75 = scmp.ne.s32.totalorder %s70, %s72
    %p76 = scmp.eq.s32.totalorder %s15, 0
    %p77 = por %p75, %p76
    %p78 = scmp.ne.s32.totalorder %s70, %s72
    %p79 = scmp.eq.s32.totalorder %s20, 1
    %p80 = por %p78, %p79
    %p81 = scmp.ne.s32.totalorder %s72, %s73
    %p82 = scmp.eq.s32.totalorder %s20, 0
    %p83 = por %p81, %p82
    %p84 = scmp.ne.s32.totalorder %s72, %s73
    %p85 = scmp.eq.s32.totalorder %s21, 1
    %p86 = por %p84, %p85
    %p88 = scmp.ne.s32.totalorder %s73, %s87
    %p89 = scmp.eq.s32.totalorder %s21, 0
    %p90 = por %p88, %p89
    %s92 = sadd.s32 %s91, 1
    %p95 = scmp.eq.s32.totalorder %s15, 1
    %p96 = scmp.ne.s32.totalorder %s91, %s93
    %p97 = scmp.eq.s32.totalorder %s15, 0
    %p98 = por %p96, %p97
    %p99 = scmp.ne.s32.totalorder %s91, %s93
    %p100 = scmp.eq.s32.totalorder %s20, 1
    %p101 = por %p99, %p100
    %p102 = scmp.ne.s32.totalorder %s93, %s94
    %p103 = scmp.eq.s32.totalorder %s20, 0
    %p104 = por %p102, %p103
    %p105 = scmp.ne.s32.totalorder %s93, %s94
    %p106 = scmp.eq.s32.totalorder %s21, 1
    %p107 = por %p105, %p106
    %p109 = scmp.ne.s32.totalorder %s94, %s108
    %p110 = scmp.eq.s32.totalorder %s21, 0
    %p111 = por %p109, %p110
    %s113 = sadd.s32 %s112, 1
    %p116 = scmp.eq.s32.totalorder %s15, 1
    %p117 = scmp.ne.s32.totalorder %s112, %s114
    %p118 = scmp.eq.s32.totalorder %s15, 0
    %p119 = por %p117, %p118
    %p120 = scmp.ne.s32.totalorder %s112, %s114
    %p121 = scmp.eq.s32.totalorder %s20, 1
    %p122 = por %p120, %p121
    %p123 = scmp.ne.s32.totalorder %s114, %s115
    %p124 = scmp.eq.s32.totalorder %s20, 0
    %p125 = por %p123, %p124
    %p126 = scmp.ne.s32.totalorder %s114, %s115
    %p127 = scmp.eq.s32.totalorder %s21, 1
    %p128 = por %p126, %p127
    %p130 = scmp.ne.s32.totalorder %s115, %s129
    %p131 = scmp.eq.s32.totalorder %s21, 0
    %p132 = por %p130, %p131
    %s134 = sadd.s32 %s133, 1
    %p137 = scmp.eq.s32.totalorder %s15, 1
    %p138 = scmp.ne.s32.totalorder %s133, %s135
    %p139 = scmp.eq.s32.totalorder %s15, 0
    %p140 = por %p138, %p139
    %p141 = scmp.ne.s32.totalorder %s133, %s135
    %p142 = scmp.eq.s32.totalorder %s20, 1
    %p143 = por %p141, %p142
    %p144 = scmp.ne.s32.totalorder %s135, %s136
    %p145 = scmp.eq.s32.totalorder %s20, 0
    %p146 = por %p144, %p145
    %p147 = scmp.ne.s32.totalorder %s135, %s136
    %p148 = scmp.eq.s32.totalorder %s21, 1
    %p149 = por %p147, %p148
    %p151 = scmp.ne.s32.totalorder %s136, %s150
    %p152 = scmp.eq.s32.totalorder %s21, 0
    %p153 = por %p151, %p152
    %s155 = sadd.s32 %s154, 1
    %p158 = scmp.eq.s32.totalorder %s15, 1
    %p159 = scmp.ne.s32.totalorder %s154, %s156
    %p160 = scmp.eq.s32.totalorder %s15, 0
    %p161 = por %p159, %p160
    %p162 = scmp.ne.s32.totalorder %s154, %s156
    %p163 = scmp.eq.s32.totalorder %s20, 1
    %p164 = por %p162, %p163
    %p165 = scmp.ne.s32.totalorder %s156, %s157
    %p166 = scmp.eq.s32.totalorder %s20, 0
    %p167 = por %p165, %p166
    %p168 = scmp.ne.s32.totalorder %s156, %s157
    %p169 = scmp.eq.s32.totalorder %s21, 1
    %p170 = por %p168, %p169
    %p172 = scmp.ne.s32.totalorder %s157, %s171
    %p173 = scmp.eq.s32.totalorder %s21, 0
    %p174 = por %p172, %p173
    %s176 = sadd.s32 %s175, 1
    %p179 = scmp.eq.s32.totalorder %s15, 1
    %p180 = scmp.ne.s32.totalorder %s175, %s177
    %p181 = scmp.eq.s32.totalorder %s15, 0
    %p182 = por %p180, %p181
    %p183 = scmp.ne.s32.totalorder %s175, %s177
    %p184 = scmp.eq.s32.totalorder %s20, 1
    %p185 = por %p183, %p184
    %p186 = scmp.ne.s32.totalorder %s177, %s178
    %p187 = scmp.eq.s32.totalorder %s20, 0
    %p188 = por %p186, %p187
    %p189 = scmp.ne.s32.totalorder %s177, %s178
    %p190 = scmp.eq.s32.totalorder %s21, 1
    %p191 = por %p189, %p190
    %p193 = scmp.ne.s32.totalorder %s178, %s192
    %p194 = scmp.eq.s32.totalorder %s21, 0
    %p195 = por %p193, %p194
    %s197 = sadd.s32 %s196, 1
    %p200 = scmp.eq.s32.totalorder %s15, 1
    %p201 = scmp.ne.s32.totalorder %s196, %s198
    %p202 = scmp.eq.s32.totalorder %s15, 0
    %p203 = por %p201, %p202
    %p204 = scmp.ne.s32.totalorder %s196, %s198
    %p205 = scmp.eq.s32.totalorder %s20, 1
    %p206 = por %p204, %p205
    %p207 = scmp.ne.s32.totalorder %s198, %s199
    %p208 = scmp.eq.s32.totalorder %s20, 0
    %p209 = por %p207, %p208
    %p210 = scmp.ne.s32.totalorder %s198, %s199
    %p211 = scmp.eq.s32.totalorder %s21, 1
    %p212 = por %p210, %p211
    %p214 = scmp.ne.s32.totalorder %s199, %s213
    %p215 = scmp.eq.s32.totalorder %s21, 0
    %p216 = por %p214, %p215
    %s217 = ssub.s32 %s15, %s22
    %p218 = scmp.eq.s32.totalorder %s217, 0
    %s220 = sadd.s32 %s219, 1
    %s221 = scalar_select %p218, %s219, %s220
    %p224 = pneg %p218
    %p225 = scmp.eq.s32.totalorder %s15, 1
    %p226 = por %p224, %p225
    %p227 = scmp.ne.s32.totalorder %s219, %s222
    %p228 = scmp.eq.s32.totalorder %s15, 0
    %p229 = por %p227, %p228
    %p230 = scmp.ne.s32.totalorder %s219, %s222
    %p231 = scmp.eq.s32.totalorder %s20, 1
    %p232 = por %p230, %p231
    %p233 = scmp.ne.s32.totalorder %s222, %s223
    %p234 = scmp.eq.s32.totalorder %s20, 0
    %p235 = por %p233, %p234
    %p236 = scmp.ne.s32.totalorder %s222, %s223
    %p237 = scmp.eq.s32.totalorder %s21, 1
    %p238 = por %p236, %p237
    %p240 = scmp.ne.s32.totalorder %s223, %s239
    %p241 = scmp.eq.s32.totalorder %s21, 0
    %p242 = por %p240, %p241
    %p243 = scmp.le.s32.totalorder 1, %s15
    %p244 = scmp.lt.s32.totalorder %s15, 3
    %p245 = pnand %p243, %p244
    %p246 = pneg %p245
    // Predicated region
    $region9: #{mdspp_forward.1} parent=5 // pred_check
      _
    $region10: #{mdspp_forward.1} parent=5 // pred_check_branch
      %248 = sbr.rel (%p245) target = $region12
    $region11: #{mdspp_forward.1} parent=5 // pred_region
      %s249 = ssub.s32 %s15, 1
      // Predicated region
      $region13: #{mdspp_forward.1} parent=11 // pred_check
        %p250 = pneg %p62
      $region14: #{mdspp_forward.1} parent=11 // pred_check_branch
        %252 = sbr.rel (%p250) target = $region16
      $region15: #{mdspp_forward.1} parent=11 // pred_region
        _
      $region16: #{mdspp_forward.1} parent=11 // pred_fallthru
        _
      // Predicated region
      $region17: #{mdspp_forward.1} parent=11 // pred_check
        %p253 = pneg %p83
      $region18: #{mdspp_forward.1} parent=11 // pred_check_branch
        %255 = sbr.rel (%p253) target = $region20
      $region19: #{mdspp_forward.1} parent=11 // pred_region
        _
      $region20: #{mdspp_forward.1} parent=11 // pred_fallthru
        _
      // Predicated region
      $region21: #{mdspp_forward.1} parent=11 // pred_check
        %p256 = pneg %p104
      $region22: #{mdspp_forward.1} parent=11 // pred_check_branch
        %258 = sbr.rel (%p256) target = $region24
      $region23: #{mdspp_forward.1} parent=11 // pred_region
        _
      $region24: #{mdspp_forward.1} parent=11 // pred_fallthru
        _
      // Predicated region
      $region25: #{mdspp_forward.1} parent=11 // pred_check
        %p259 = pneg %p125
      $region26: #{mdspp_forward.1} parent=11 // pred_check_branch
        %261 = sbr.rel (%p259) target = $region28
      $region27: #{mdspp_forward.1} parent=11 // pred_region
        _
      $region28: #{mdspp_forward.1} parent=11 // pred_fallthru
        _
      // Predicated region
      $region29: #{mdspp_forward.1} parent=11 // pred_check
        %p262 = pneg %p146
      $region30: #{mdspp_forward.1} parent=11 // pred_check_branch
        %264 = sbr.rel (%p262) target = $region32
      $region31: #{mdspp_forward.1} parent=11 // pred_region
        _
      $region32: #{mdspp_forward.1} parent=11 // pred_fallthru
        _
      // Predicated region
      $region33: #{mdspp_forward.1} parent=11 // pred_check
        %p265 = pneg %p167
      $region34: #{mdspp_forward.1} parent=11 // pred_check_branch
        %267 = sbr.rel (%p265) target = $region36
      $region35: #{mdspp_forward.1} parent=11 // pred_region
        _
      $region36: #{mdspp_forward.1} parent=11 // pred_fallthru
        _
      // Predicated region
      $region37: #{mdspp_forward.1} parent=11 // pred_check
        %p268 = pneg %p188
      $region38: #{mdspp_forward.1} parent=11 // pred_check_branch
        %270 = sbr.rel (%p268) target = $region40
      $region39: #{mdspp_forward.1} parent=11 // pred_region
        _
      $region40: #{mdspp_forward.1} parent=11 // pred_fallthru
        _
      // Predicated region
      $region41: #{mdspp_forward.1} parent=11 // pred_check
        %p271 = pneg %p209
      $region42: #{mdspp_forward.1} parent=11 // pred_check_branch
        %273 = sbr.rel (%p271) target = $region44
      $region43: #{mdspp_forward.1} parent=11 // pred_region
        _
      $region44: #{mdspp_forward.1} parent=11 // pred_fallthru
        _
    $region12: #{mdspp_forward.1} parent=5 // pred_fallthru
      _
    %p274 = scmp.lt.s32.totalorder %s15, 2
    // Predicated region
    $region45: #{mdspp_forward.1} parent=5 // pred_check
      %p275 = pneg %p274
    $region46: #{mdspp_forward.1} parent=5 // pred_check_branch
      %277 = sbr.rel (%p275) target = $region48
    $region47: #{mdspp_forward.1} parent=5 // pred_region
      // Predicated region
      $region49: #{mdspp_forward.1} parent=47 // pred_check
        %p278 = pneg %p35
      $region50: #{mdspp_forward.1} parent=47 // pred_check_branch
        %280 = sbr.rel (%p278) target = $region52
      $region51: #{mdspp_forward.1} parent=47 // pred_region
        %p281 = scmp.lt.s32.totalorder %s15, 1
        %s282 = scalar_select %p281, %s15, 1
        %s283 = smul.addr %s282, 8
        %s284 = smul.addr %s283, 4
        %s285 = scalar_lea.vmem %s0, %s284
      $region52: #{mdspp_forward.1} parent=47 // pred_fallthru
        _
    $region48: #{mdspp_forward.1} parent=5 // pred_fallthru
      _
    %p286 = scmp.le.s32.totalorder 1, %s15
    %p287 = scmp.lt.s32.totalorder %s15, 3
    %p288 = pnand %p286, %p287
    %p289 = pneg %p288
    // Predicated region
    $region53: #{mdspp_forward.1} parent=5 // pred_check
      _
    $region54: #{mdspp_forward.1} parent=5 // pred_check_branch
      %291 = sbr.rel (%p288) target = $region56
    $region55: #{mdspp_forward.1} parent=5 // pred_region
      %s292 = ssub.s32 %s15, 1
      %p293 = scmp.lt.s32.totalorder %s20, 1
      %s294 = scalar_select %p293, %s20, 1
      %s295 = smul.addr %s294, 8
      %s296 = smul.addr %s295, 4
      %s297 = scalar_lea.vmem %s0, %s296
      %p298 = pneg %p41
      %p299 = pneg %p38
      %p300 = pneg %p62
      %p301 = pneg %p59
      %p302 = pneg %p83
      %p303 = pneg %p80
      %p304 = pneg %p104
      %p305 = pneg %p101
      %p306 = pneg %p125
      %p307 = pneg %p122
      %p308 = pneg %p146
      %p309 = pneg %p143
      %p310 = pneg %p167
      %p311 = pneg %p164
      %p312 = pneg %p188
      %p313 = pneg %p185
      %p314 = pneg %p209
      %p315 = pneg %p206
      %p316 = pneg %p235
      %p317 = pneg %p232
      %p318 = scmp.lt.s32.totalorder %s20, 1
      %s319 = scalar_select %p318, %s20, 1
      %s320 = smul.addr %s319, 2
      %s321 = smul.addr %s320, 8
      %s322 = scalar_lea.vmem %s9, %s321
      %p323 = scmp.lt.s32.totalorder %s20, 1
      %s324 = scalar_select %p323, %s20, 1
      %s325 = smul.addr %s324, 8
      %s326 = smul.addr %s325, 4
      %s327 = scalar_lea.vmem %s0, %s326
      %p328 = scmp.lt.s32.totalorder %s20, 1
      %s329 = scalar_select %p328, %s20, 1
      %s330 = smul.addr %s329, 2
      %s331 = smul.addr %s330, 8
      %s332 = scalar_lea.vmem %s9, %s331
      %v334 = vld [vmem:[%s1] sm:$0xf]
      %v335 = vld [vmem:[%s1 + $0x4] sm:$0xf]
      %v336 = vld [vmem:[%s1 + $0x8] sm:$0xf]
      %v337 = vld [vmem:[%s1 + $0xc] sm:$0xf]
      %v338 = vld [vmem:[%s1 + $0x10] sm:$0xf]
      %v339 = vld [vmem:[%s1 + $0x14] sm:$0xf]
      %v340 = vld [vmem:[%s1 + $0x18] sm:$0xf]
      %v341 = vld [vmem:[%s1 + $0x1c] sm:$0xf]
      %v342 = vld [vmem:[%s1 + $0x20] sm:$0xf]
      %v343 = vld [vmem:[%s1 + $0x24] sm:$0xf]
      %v344 = vld [vmem:[%s1 + $0x28] sm:$0xf]
      %v345 = vld [vmem:[%s1 + $0x2c] sm:$0xf]
      %v346 = vld [vmem:[%s1 + $0x30] sm:$0xf]
      %v347 = vld [vmem:[%s1 + $0x34] sm:$0xf]
      %v348 = vld [vmem:[%s1 + $0x38] sm:$0xf]
      %v349 = vld [vmem:[%s1 + $0x3c] sm:$0xf]
      %v350 = vld [vmem:[%s1 + $0x40] sm:$0xf]
      %v351 = vld [vmem:[%s1 + $0x44] sm:$0xf]
      %v352 = vld [vmem:[%s1 + $0x48] sm:$0xf]
      %v353 = vld [vmem:[%s1 + $0x4c] sm:$0xf]
      %v354 = vld [vmem:[%s1 + $0x50] sm:$0xf]
      %v355 = vld [vmem:[%s1 + $0x54] sm:$0xf]
      %v356 = vld [vmem:[%s1 + $0x58] sm:$0xf]
      %v357 = vld [vmem:[%s1 + $0x5c] sm:$0xf]
      %v358 = vld [vmem:[%s1 + $0x60] sm:$0xf]
      %v359 = vld [vmem:[%s1 + $0x64] sm:$0xf]
      %v360 = vld [vmem:[%s1 + $0x68] sm:$0xf]
      %v361 = vld [vmem:[%s1 + $0x6c] sm:$0xf]
      %v362 = vld [vmem:[%s1 + $0x70] sm:$0xf]
      %v363 = vld [vmem:[%s1 + $0x74] sm:$0xf]
      %v364 = vld [vmem:[%s1 + $0x78] sm:$0xf]
      %v365 = vld [vmem:[%s1 + $0x7c] sm:$0xf]
      %v366 = vld [vmem:[%s327] sm:$0xff]
      %v367 = vld [vmem:[%s327 + $0x8] sm:$0xff]
      %v368 = vld [vmem:[%s327 + $0x10] sm:$0xff]
      %v369 = vld [vmem:[%s327 + $0x18] sm:$0xff]
      %v374 = vunpack.c.l.b16 %v366
      %v375 = vunpack.c.h.b16 %v366
      %v376 = vunpack.c.l.b16 %v367
      %v377 = vunpack.c.h.b16 %v367
      %v378 = vunpack.c.l.b16 %v368
      %v379 = vunpack.c.h.b16 %v368
      %v380 = vunpack.c.l.b16 %v369
      %v381 = vunpack.c.h.b16 %v369
      %v382 = vpack.c.b16 %v376, %v374
      %v383 = vpack.c.b16 %v377, %v375
      %v384 = vpack.c.b16 %v380, %v378
      %v385 = vpack.c.b16 %v381, %v379
      %v422 = vunpack.c.l.b16 %v334
      %v423 = vunpack.c.l.b16 %v335
      %v424 = vunpack.c.l.b16 %v336
      %v425 = vunpack.c.l.b16 %v337
      %v426 = vunpack.c.l.b16 %v338
      %v427 = vunpack.c.l.b16 %v339
      %v428 = vunpack.c.l.b16 %v340
      %v429 = vunpack.c.l.b16 %v341
      %v430 = vunpack.c.l.b16 %v342
      %v431 = vunpack.c.l.b16 %v343
      %v432 = vunpack.c.l.b16 %v344
      %v433 = vunpack.c.l.b16 %v345
      %v434 = vunpack.c.l.b16 %v346
      %v435 = vunpack.c.l.b16 %v347
      %v436 = vunpack.c.l.b16 %v348
      %v437 = vunpack.c.l.b16 %v349
      %v438 = vunpack.c.l.b16 %v350
      %v439 = vunpack.c.l.b16 %v351
      %v440 = vunpack.c.l.b16 %v352
      %v441 = vunpack.c.l.b16 %v353
      %v442 = vunpack.c.l.b16 %v354
      %v443 = vunpack.c.l.b16 %v355
      %v444 = vunpack.c.l.b16 %v356
      %v445 = vunpack.c.l.b16 %v357
      %v446 = vunpack.c.l.b16 %v358
      %v447 = vunpack.c.l.b16 %v359
      %v448 = vunpack.c.l.b16 %v360
      %v449 = vunpack.c.l.b16 %v361
      %v450 = vunpack.c.l.b16 %v362
      %v451 = vunpack.c.l.b16 %v363
      %v452 = vunpack.c.l.b16 %v364
      %v453 = vunpack.c.l.b16 %v365
      %v454 = vpack.c.b16 %v423, %v422
      %v455 = vpack.c.b16 %v425, %v424
      %v456 = vpack.c.b16 %v427, %v426
      %v457 = vpack.c.b16 %v429, %v428
      %v458 = vpack.c.b16 %v431, %v430
      %v459 = vpack.c.b16 %v433, %v432
      %v460 = vpack.c.b16 %v435, %v434
      %v461 = vpack.c.b16 %v437, %v436
      %v462 = vpack.c.b16 %v439, %v438
      %v463 = vpack.c.b16 %v441, %v440
      %v464 = vpack.c.b16 %v443, %v442
      %v465 = vpack.c.b16 %v445, %v444
      %v466 = vpack.c.b16 %v447, %v446
      %v467 = vpack.c.b16 %v449, %v448
      %v468 = vpack.c.b16 %v451, %v450
      %v469 = vpack.c.b16 %v453, %v452
      %486 = vmatprep.subr.bf16.mxu0 0
      %487 = vmatpush1.bf16.msra.mxu0 %v454
      %488 = vmatprep.subr.bf16.mxu0 0
      %489 = vmatpush1.bf16.msra.mxu0 %v455
      %490 = vmatprep.subr.bf16.mxu0 0
      %491 = vmatpush1.bf16.msra.mxu0 %v456
      %492 = vmatprep.subr.bf16.mxu0 0
      %493 = vmatpush1.bf16.msra.mxu0 %v457
      %494 = vmatprep.subr.bf16.mxu0 0
      %495 = vmatpush1.bf16.msra.mxu0 %v458
      %496 = vmatprep.subr.bf16.mxu0 0
      %497 = vmatpush1.bf16.msra.mxu0 %v459
      %498 = vmatprep.subr.bf16.mxu0 0
      %499 = vmatpush1.bf16.msra.mxu0 %v460
      %500 = vmatprep.subr.bf16.mxu0 0
      %501 = vmatpush1.bf16.msra.mxu0 %v461
      %502 = vmatprep.subr.bf16.mxu0 0
      %503 = vmatpush1.bf16.msra.mxu0 %v462
      %504 = vmatprep.subr.bf16.mxu0 0
      %505 = vmatpush1.bf16.msra.mxu0 %v463
      %506 = vmatprep.subr.bf16.mxu0 0
      %507 = vmatpush1.bf16.msra.mxu0 %v464
      %508 = vmatprep.subr.bf16.mxu0 0
      %509 = vmatpush1.bf16.msra.mxu0 %v465
      %510 = vmatprep.subr.bf16.mxu0 0
      %511 = vmatpush1.bf16.msra.mxu0 %v466
      %512 = vmatprep.subr.bf16.mxu0 0
      %513 = vmatpush1.bf16.msra.mxu0 %v467
      %514 = vmatprep.subr.bf16.mxu0 0
      %515 = vmatpush1.bf16.msra.mxu0 %v468
      %516 = vmatprep.subr.bf16.mxu0 0
      %517 = vmatpush1.bf16.msra.mxu0 %v469
      %518 = vmatprep.mubr.bf16.mxu0 %v383
      %519 = vmatmul.mubr.bf16.gmra.mrb[0].mxu0 %v382
      %v520 = vpop.f32.mrb[0].mxu0
      %v521 = vadd.f32 0.0, %v520
      %v522 = vpop.f32.mrb[0].mxu0
      %v523 = vpop.f32.mrb[0].mxu0
      %v524 = vadd.f32 0.0, %v523
      %v525 = vpop.f32.mrb[0].mxu0
      %526 = vmatprep.mubr.bf16.mxu0 %v385
      %527 = vmatmul.mubr.bf16.gmra.mrb[0].mxu0 %v384
      %v528 = vpop.f32.mrb[0].mxu0
      %v529 = vadd.f32 0.0, %v528
      %v530 = vpop.f32.mrb[0].mxu0
      %v531 = vpop.f32.mrb[0].mxu0
      %v532 = vadd.f32 0.0, %v531
      %v533 = vpop.f32.mrb[0].mxu0
      %534 = vdwg.mxu0
      %v535 = vpack.c.bf16 %v524, %v521
      %v536 = vpack.c.bf16 %v532, %v529
      %v537 = vld [vmem:[%s3] sm:$0xf]
      %v538 = vld [vmem:[%s3 + $0x4] sm:$0xf]
      %v539 = vld [vmem:[%s3 + $0x8] sm:$0xf]
      %v540 = vld [vmem:[%s3 + $0xc] sm:$0xf]
      %v541 = vld [vmem:[%s4] sm:$0xff]
      %v542 = vld [vmem:[%s4 + $0x8] sm:$0xff]
      %v543 = vld [vmem:[%s4 + $0x10] sm:$0xff]
      %v544 = vld [vmem:[%s4 + $0x18] sm:$0xff]
      %546 = vset.pattern.permute.xlu0 0
      %547 = vperm.xlu0 %546, %v541
      %v548 = vpop.permute.xlu0 %547
      %551 = vset.pattern.permute.xlu0 0
      %552 = vperm.xlu0 %551, %v542
      %v553 = vpop.permute.xlu0 %552
      %556 = vset.pattern.permute.xlu0 0
      %557 = vperm.xlu0 %556, %v543
      %v558 = vpop.permute.xlu0 %557
      %561 = vset.pattern.permute.xlu0 0
      %562 = vperm.xlu0 %561, %v544
      %v563 = vpop.permute.xlu0 %562
      %v569 = vunpack.c.l.b16 %v537
      %v570 = vunpack.c.l.b16 %v538
      %v571 = vunpack.c.l.b16 %v539
      %v572 = vunpack.c.l.b16 %v540
      %v573 = vpack.c.b16 %v570, %v569
      %v574 = vpack.c.b16 %v572, %v571
      %vm575 = vcmask 261120
      %v577 = vsel %vm575, %v573, 0
      %v580 = vsel %vm575, %v574, 0
      %582 = vmatprep.subr.bf16.mxu0 0
      %583 = vmatpush1.bf16.msra.mxu0 %v535
      %584 = vmatprep.subr.bf16.mxu0 0
      %585 = vmatpush1.bf16.msra.mxu0 %v536
      %586 = vmatprep.subr.bf16.mxu0 0
      %587 = vmatpush1.bf16.msra.mxu0 0
      %588 = vmatprep.subr.bf16.mxu0 0
      %589 = vmatpush1.bf16.msra.mxu0 0
      %590 = vmatprep.subr.bf16.mxu0 0
      %591 = vmatpush1.bf16.msra.mxu0 0
      %592 = vmatprep.subr.bf16.mxu0 0
      %593 = vmatpush1.bf16.msra.mxu0 0
      %594 = vmatprep.subr.bf16.mxu0 0
      %595 = vmatpush1.bf16.msra.mxu0 0
      %596 = vmatprep.subr.bf16.mxu0 0
      %597 = vmatpush1.bf16.msra.mxu0 0
      %598 = vmatprep.subr.bf16.mxu0 0
      %599 = vmatpush1.bf16.msra.mxu0 0
      %600 = vmatprep.subr.bf16.mxu0 0
      %601 = vmatpush1.bf16.msra.mxu0 0
      %602 = vmatprep.subr.bf16.mxu0 0
      %603 = vmatpush1.bf16.msra.mxu0 0
      %604 = vmatprep.subr.bf16.mxu0 0
      %605 = vmatpush1.bf16.msra.mxu0 0
      %606 = vmatprep.subr.bf16.mxu0 0
      %607 = vmatpush1.bf16.msra.mxu0 0
      %608 = vmatprep.subr.bf16.mxu0 0
      %609 = vmatpush1.bf16.msra.mxu0 0
      %610 = vmatprep.subr.bf16.mxu0 0
      %611 = vmatpush1.bf16.msra.mxu0 0
      %612 = vmatprep.subr.bf16.mxu0 0
      %613 = vmatpush1.bf16.msra.mxu0 0
      %614 = vmatprep.mubr.bf16.mxu0 0
      %615 = vmatmul.mubr.bf16.gmra.mrb[0].mxu0 %v577
      %v616 = vpop.f32.mrb[0].mxu0
      %v617 = vadd.f32 %v548, %v616
      %v618 = vpop.f32.mrb[0].mxu0
      %v619 = vpop.f32.mrb[0].mxu0
      %v620 = vadd.f32 %v553, %v619
      %v621 = vpop.f32.mrb[0].mxu0
      %622 = vmatprep.mubr.bf16.mxu0 0
      %623 = vmatmul.mubr.bf16.gmra.mrb[0].mxu0 %v580
      %v624 = vpop.f32.mrb[0].mxu0
      %v625 = vadd.f32 %v558, %v624
      %v626 = vpop.f32.mrb[0].mxu0
      %v627 = vpop.f32.mrb[0].mxu0
      %v628 = vadd.f32 %v563, %v627
      %v629 = vpop.f32.mrb[0].mxu0
      %630 = vdwg.mxu0
      %v631 = vmax.f32 %v617, 0.0
      %v632 = vmax.f32 %v620, 0.0
      %v633 = vmax.f32 %v625, 0.0
      %v634 = vmax.f32 %v628, 0.0
      %v635 = vld [vmem:[%s5] sm:$0xff]
      %v636 = vld [vmem:[%s5 + $0x8] sm:$0xff]
      %v637 = vld [vmem:[%s5 + $0x10] sm:$0xff]
      %v638 = vld [vmem:[%s5 + $0x18] sm:$0xff]
      %v639 = vmul.f32 %v631, %v635
      %v640 = vmul.f32 %v632, %v636
      %v641 = vmul.f32 %v633, %v637
      %v642 = vmul.f32 %v634, %v638
      %v643 = vpack.c.bf16 %v640, %v639
      %v644 = vpack.c.bf16 %v642, %v641
      %v645 = vld [vmem:[%s6] sm:$0xf]
      %v647 = vsel %vm575, %v645, 0
      %649 = vmatprep.subr.bf16.mxu0 0
      %650 = vmatpush1.bf16.msra.mxu0 %v643
      %651 = vmatprep.subr.bf16.mxu0 0
      %652 = vmatpush1.bf16.msra.mxu0 %v644
      %653 = vmatprep.subr.bf16.mxu0 0
      %654 = vmatpush1.bf16.msra.mxu0 0
      %655 = vmatprep.subr.bf16.mxu0 0
      %656 = vmatpush1.bf16.msra.mxu0 0
      %657 = vmatprep.subr.bf16.mxu0 0
      %658 = vmatpush1.bf16.msra.mxu0 0
      %659 = vmatprep.subr.bf16.mxu0 0
      %660 = vmatpush1.bf16.msra.mxu0 0
      %661 = vmatprep.subr.bf16.mxu0 0
      %662 = vmatpush1.bf16.msra.mxu0 0
      %663 = vmatprep.subr.bf16.mxu0 0
      %664 = vmatpush1.bf16.msra.mxu0 0
      %665 = vmatprep.subr.bf16.mxu0 0
      %666 = vmatpush1.bf16.msra.mxu0 0
      %667 = vmatprep.subr.bf16.mxu0 0
      %668 = vmatpush1.bf16.msra.mxu0 0
      %669 = vmatprep.subr.bf16.mxu0 0
      %670 = vmatpush1.bf16.msra.mxu0 0
      %671 = vmatprep.subr.bf16.mxu0 0
      %672 = vmatpush1.bf16.msra.mxu0 0
      %673 = vmatprep.subr.bf16.mxu0 0
      %674 = vmatpush1.bf16.msra.mxu0 0
      %675 = vmatprep.subr.bf16.mxu0 0
      %676 = vmatpush1.bf16.msra.mxu0 0
      %677 = vmatprep.subr.bf16.mxu0 0
      %678 = vmatpush1.bf16.msra.mxu0 0
      %679 = vmatprep.subr.bf16.mxu0 0
      %680 = vmatpush1.bf16.msra.mxu0 0
      %681 = vmatprep.mubr.bf16.mxu0 0
      %682 = vmatmul.mubr.bf16.gmra.mrb[0].mxu0 %v647
      %v683 = vpop.f32.mrb[0].mxu0
      %v684 = vadd.f32 0.0, %v683
      %v685 = vpop.f32.mrb[0].mxu0
      %v686 = vpop.f32.mrb[0].mxu0
      %v687 = vpop.f32.mrb[0].mxu0
      %688 = vdwg.mxu0
      %v689 = vpack.c.bf16 %v684, %v684
      %v690 = vld [vmem:[%s2] sm:$0xff]
      %v691 = vld [vmem:[%s2 + $0x8] sm:$0xff]
      %v692 = vld [vmem:[%s2 + $0x10] sm:$0xff]
      %v693 = vld [vmem:[%s2 + $0x18] sm:$0xff]
      %v694 = vld [vmem:[%s2 + $0x20] sm:$0xff]
      %v695 = vld [vmem:[%s2 + $0x28] sm:$0xff]
      %v696 = vld [vmem:[%s2 + $0x30] sm:$0xff]
      %v697 = vld [vmem:[%s2 + $0x38] sm:$0xff]
      %v698 = vld [vmem:[%s2 + $0x40] sm:$0xff]
      %v699 = vld [vmem:[%s2 + $0x48] sm:$0xff]
      %v700 = vld [vmem:[%s2 + $0x50] sm:$0xff]
      %v701 = vld [vmem:[%s2 + $0x58] sm:$0xff]
      %v702 = vld [vmem:[%s2 + $0x60] sm:$0xff]
      %v703 = vld [vmem:[%s2 + $0x68] sm:$0xff]
      %v704 = vld [vmem:[%s2 + $0x70] sm:$0xff]
      %v705 = vld [vmem:[%s2 + $0x78] sm:$0xff]
      %v706 = vld [vmem:[%s7] sm:$0xf]
      %v707 = vld [vmem:[%s8] sm:$0xff]
      %v724 = vunpack.c.l.b16 %v690
      %v725 = vunpack.c.h.b16 %v690
      %v726 = vunpack.c.l.b16 %v691
      %v727 = vunpack.c.h.b16 %v691
      %v728 = vunpack.c.l.b16 %v692
      %v729 = vunpack.c.h.b16 %v692
      %v730 = vunpack.c.l.b16 %v693
      %v731 = vunpack.c.h.b16 %v693
      %v732 = vunpack.c.l.b16 %v694
      %v733 = vunpack.c.h.b16 %v694
      %v734 = vunpack.c.l.b16 %v695
      %v735 = vunpack.c.h.b16 %v695
      %v736 = vunpack.c.l.b16 %v696
      %v737 = vunpack.c.h.b16 %v696
      %v738 = vunpack.c.l.b16 %v697
      %v739 = vunpack.c.h.b16 %v697
      %v740 = vunpack.c.l.b16 %v698
      %v741 = vunpack.c.h.b16 %v698
      %v742 = vunpack.c.l.b16 %v699
      %v743 = vunpack.c.h.b16 %v699
      %v744 = vunpack.c.l.b16 %v700
      %v745 = vunpack.c.h.b16 %v700
      %v746 = vunpack.c.l.b16 %v701
      %v747 = vunpack.c.h.b16 %v701
      %v748 = vunpack.c.l.b16 %v702
      %v749 = vunpack.c.h.b16 %v702
      %v750 = vunpack.c.l.b16 %v703
      %v751 = vunpack.c.h.b16 %v703
      %v752 = vunpack.c.l.b16 %v704
      %v753 = vunpack.c.h.b16 %v704
      %v754 = vunpack.c.l.b16 %v705
      %v755 = vunpack.c.h.b16 %v705
      %v756 = vpack.c.b16 %v726, %v724
      %v757 = vpack.c.b16 %v727, %v725
      %v758 = vpack.c.b16 %v730, %v728
      %v759 = vpack.c.b16 %v731, %v729
      %v760 = vpack.c.b16 %v734, %v732
      %v761 = vpack.c.b16 %v735, %v733
      %v762 = vpack.c.b16 %v738, %v736
      %v763 = vpack.c.b16 %v739, %v737
      %v764 = vpack.c.b16 %v742, %v740
      %v765 = vpack.c.b16 %v743, %v741
      %v766 = vpack.c.b16 %v746, %v744
      %v767 = vpack.c.b16 %v747, %v745
      %v768 = vpack.c.b16 %v750, %v748
      %v769 = vpack.c.b16 %v751, %v749
      %v770 = vpack.c.b16 %v754, %v752
      %v771 = vpack.c.b16 %v755, %v753
      %788 = vmatprep.subr.bf16.mxu0 %v757
      %789 = vmatpush1.bf16.msra.mxu0 %v756
      %790 = vmatprep.subr.bf16.mxu0 %v759
      %791 = vmatpush1.bf16.msra.mxu0 %v758
      %792 = vmatprep.subr.bf16.mxu0 %v761
      %793 = vmatpush1.bf16.msra.mxu0 %v760
      %794 = vmatprep.subr.bf16.mxu0 %v763
      %795 = vmatpush1.bf16.msra.mxu0 %v762
      %796 = vmatprep.subr.bf16.mxu0 %v765
      %797 = vmatpush1.bf16.msra.mxu0 %v764
      %798 = vmatprep.subr.bf16.mxu0 %v767
      %799 = vmatpush1.bf16.msra.mxu0 %v766
      %800 = vmatprep.subr.bf16.mxu0 %v769
      %801 = vmatpush1.bf16.msra.mxu0 %v768
      %802 = vmatprep.subr.bf16.mxu0 %v771
      %803 = vmatpush1.bf16.msra.mxu0 %v770
      %804 = vmatprep.subr.bf16.mxu0 0
      %805 = vmatpush1.bf16.msra.mxu0 0
      %806 = vmatprep.subr.bf16.mxu0 0
      %807 = vmatpush1.bf16.msra.mxu0 0
      %808 = vmatprep.subr.bf16.mxu0 0
      %809 = vmatpush1.bf16.msra.mxu0 0
      %810 = vmatprep.subr.bf16.mxu0 0
      %811 = vmatpush1.bf16.msra.mxu0 0
      %812 = vmatprep.subr.bf16.mxu0 0
      %813 = vmatpush1.bf16.msra.mxu0 0
      %814 = vmatprep.subr.bf16.mxu0 0
      %815 = vmatpush1.bf16.msra.mxu0 0
      %816 = vmatprep.subr.bf16.mxu0 0
      %817 = vmatpush1.bf16.msra.mxu0 0
      %818 = vmatprep.subr.bf16.mxu0 0
      %819 = vmatpush1.bf16.msra.mxu0 0
      %820 = vmatprep.mubr.bf16.mxu0 0
      %821 = vmatmul.mubr.bf16.gmra.mrb[0].mxu0 %v689
      %v822 = vpop.f32.mrb[0].mxu0
      %v823 = vadd.f32 0.0, %v822
      %v824 = vpop.f32.mrb[0].mxu0
      %v825 = vadd.f32 0.0, %v824
      %v826 = vpop.f32.mrb[0].mxu0
      %v827 = vpop.f32.mrb[0].mxu0
      %828 = vdwg.mxu0
      %v830 = vsel %vm575, %v706, 0
      %832 = vmatprep.subr.bf16.mxu0 %v383
      %833 = vmatpush1.bf16.msra.mxu0 %v382
      %834 = vmatprep.subr.bf16.mxu0 %v385
      %835 = vmatpush1.bf16.msra.mxu0 %v384
      %836 = vmatprep.subr.bf16.mxu0 0
      %837 = vmatpush1.bf16.msra.mxu0 0
      %838 = vmatprep.subr.bf16.mxu0 0
      %839 = vmatpush1.bf16.msra.mxu0 0
      %840 = vmatprep.subr.bf16.mxu0 0
      %841 = vmatpush1.bf16.msra.mxu0 0
      %842 = vmatprep.subr.bf16.mxu0 0
      %843 = vmatpush1.bf16.msra.mxu0 0
      %844 = vmatprep.subr.bf16.mxu0 0
      %845 = vmatpush1.bf16.msra.mxu0 0
      %846 = vmatprep.subr.bf16.mxu0 0
      %847 = vmatpush1.bf16.msra.mxu0 0
      %848 = vmatprep.subr.bf16.mxu0 0
      %849 = vmatpush1.bf16.msra.mxu0 0
      %850 = vmatprep.subr.bf16.mxu0 0
      %851 = vmatpush1.bf16.msra.mxu0 0
      %852 = vmatprep.subr.bf16.mxu0 0
      %853 = vmatpush1.bf16.msra.mxu0 0
      %854 = vmatprep.subr.bf16.mxu0 0
      %855 = vmatpush1.bf16.msra.mxu0 0
      %856 = vmatprep.subr.bf16.mxu0 0
      %857 = vmatpush1.bf16.msra.mxu0 0
      %858 = vmatprep.subr.bf16.mxu0 0
      %859 = vmatpush1.bf16.msra.mxu0 0
      %860 = vmatprep.subr.bf16.mxu0 0
      %861 = vmatpush1.bf16.msra.mxu0 0
      %862 = vmatprep.subr.bf16.mxu0 0
      %863 = vmatpush1.bf16.msra.mxu0 0
      %864 = vmatprep.mubr.bf16.mxu0 0
      %865 = vmatmul.mubr.bf16.gmra.mrb[0].mxu0 %v830
      %v866 = vpop.f32.mrb[0].mxu0
      %v867 = vadd.f32 %v823, %v866
      %v868 = vpop.f32.mrb[0].mxu0
      %v869 = vadd.f32 %v825, %v868
      %v870 = vpop.f32.mrb[0].mxu0
      %v871 = vpop.f32.mrb[0].mxu0
      %872 = vdwg.mxu0
      %874 = vset.pattern.permute.xlu0 0
      %875 = vperm.xlu0 %874, %v707
      %v876 = vpop.permute.xlu0 %875
      %v878 = vadd.f32 %v867, %v876
      %v879 = vadd.f32 %v869, %v876
      %v880 = vmax.f32 %v878, 0.0
      %v881 = vmax.f32 %v879, 0.0
      %882 = vst [vmem:[%s332] sm:$0xff] %v880
      %883 = vst [vmem:[%s332 + $0x8] sm:$0xff] %v881
      %p884 = scmp.lt.s32.totalorder %s20, 1
      %s885 = scalar_select %p884, %s20, 1
      %s886 = smul.addr %s885, 2
      %s887 = smul.addr %s886, 8
      %s888 = scalar_lea.vmem %s9, %s887
      // Predicated region
      $region57: #{mdspp_forward.1} parent=55 // pred_check
        %p889 = pneg %p232
      $region58: #{mdspp_forward.1} parent=55 // pred_check_branch
        %891 = sbr.rel (%p889) target = $region60
      $region59: #{mdspp_forward.1} parent=55 // pred_region
        _
      $region60: #{mdspp_forward.1} parent=55 // pred_fallthru
        _
    $region56: #{mdspp_forward.1} parent=5 // pred_fallthru
      _
    %p892 = scmp.le.s32.totalorder 2, %s15
    // Predicated region
    $region61: #{mdspp_forward.1} parent=5 // pred_check
      %p893 = pneg %p892
    $region62: #{mdspp_forward.1} parent=5 // pred_check_branch
      %895 = sbr.rel (%p893) target = $region64
    $region63: #{mdspp_forward.1} parent=5 // pred_region
      %s896 = ssub.s32 %s15, 2
      // Predicated region
      $region65: #{mdspp_forward.1} parent=63 // pred_check
        %p897 = pneg %p238
      $region66: #{mdspp_forward.1} parent=63 // pred_check_branch
        %899 = sbr.rel (%p897) target = $region68
      $region67: #{mdspp_forward.1} parent=63 // pred_region
        %p900 = scmp.lt.s32.totalorder %s21, 1
        %s901 = scalar_select %p900, %s21, 1
        %s902 = smul.addr %s901, 2
        %s903 = smul.addr %s902, 8
        %s904 = scalar_lea.vmem %s9, %s903
      $region68: #{mdspp_forward.1} parent=63 // pred_fallthru
        _
    $region64: #{mdspp_forward.1} parent=5 // pred_fallthru
      _
  $region6: #{mdspp_forward.1} parent=0 // loop_footer
    %s19 = sadd.s32 1, %s15
  $region7: #{mdspp_forward.1} parent=0 // loop_footer_branch
    %14 = sbr.rel target = $region3
  $region8: #{mdspp_forward.1} parent=0 // loop_exit
    _

</llo_original>
